<compile_context>
chip_gen: v7x
topology: tpu7x:2x2x1
jax: 0.10.0
libtpu: 0.0.40
codegen_flags: <defaults>
</compile_context>

<pallas_src>
import functools
import math

import jax
import jax.numpy as jnp
from jax import lax
from jax.experimental import pallas as pl
from jax.experimental.pallas import tpu as pltpu


def _round_up(x, m):
    return ((x + m - 1) // m) * m


def _vmem_capacity_bytes():
    try:
        return int(pltpu.get_tpu_info().vmem_capacity_bytes)
    except Exception:
        return 64 << 20  # conservative fallback = v7x physical VMEM per TensorCore


def _fold_factor(batch, num_feature):
    """Samples folded per row so the folded row width is a multiple of 128 lanes."""
    if num_feature >= 128:
        return 1
    k = 128 // math.gcd(num_feature, 128)  # smallest k with (k * F) % 128 == 0
    # TODO(synk): pad the batch tail instead of disabling folding when B % k != 0.
    return k if batch % k == 0 else 1


def _choose_row_tile(num_rows, x_row_bytes, out_row_bytes, vmem_cap):
    """Rows per grid step: large enough to amortize per-step overhead (~8 MiB X
    buffers), small enough that the double-buffered pipeline stays within ~50% of
    VMEM, and capped at ceil(rows/2) so a 2-TC chip (v7x) gets >= 2 grid steps."""
    x_buf_target = min(8 << 20, vmem_cap // 8)          # ~4-8 MiB per X buffer
    tr = x_buf_target // max(1, x_row_bytes)
    budget = vmem_cap // 2                               # whole-pipeline VMEM budget
    per_row = 2 * x_row_bytes + 2 * out_row_bytes        # 2x-buffered X + out rows
    tr = min(tr, budget // max(1, per_row))
    tr = max(8, (tr // 8) * 8)                           # f32 sublane multiple
    half = _round_up(max(1, -(-num_rows // 2)), 8)       # megacore: keep grid >= 2
    tr = min(tr, half)
    if tr >= num_rows:
        tr = num_rows                                    # full-extent block is legal
    return tr


def _linear_kernel(x_ref, w_ref, b_ref, o_ref, *, num_feature, fold):
    # x_ref: (TR, fold*F) streamed X tile (native dtype), lane-dense after folding.
    # w_ref: (1, F) f32 resident, lane-dense weight.   b_ref: (1,) f32 SMEM scalar.
    # o_ref: (TR, fold) f32; flat HBM order of the full output == batch order.
    x = x_ref[...].astype(jnp.float32)   # upcast on the VPU (v5e has no bf16 VALU)
    w = w_ref[...]                       # (1, F)
    f = num_feature
    if fold == 1:
        acc = jnp.sum(x * w, axis=-1, keepdims=True)                 # (TR, 1) f32
    else:
        # One exact-f32 VPU multiply + lane reduction per folded segment; each
        # segment's sums are selected into its own output lane (no relayout).
        lane = lax.broadcasted_iota(jnp.int32, (1, fold), 1)         # (1, fold)
        acc = jnp.zeros((x.shape[0], fold), jnp.float32)
        for s in range(fold):            # static unroll (fold is a Python int)
            seg = x[:, s * f:(s + 1) * f]                            # static lane slice
            seg_sum = jnp.sum(seg * w, axis=-1, keepdims=True)       # (TR, 1) f32
            acc = jnp.where(lane == s, seg_sum, acc)                 # place in lane s
    o_ref[...] = (acc + b_ref[0]).astype(o_ref.dtype)


def linear_regression(x, weight, bias):
    """x: (B, F); weight: (1, F) (PyTorch nn.Linear layout); bias: (1,). -> (B, 1)."""
    B, F = x.shape
    w = jnp.asarray(weight, jnp.float32).reshape(1, F)   # lane-dense, resident
    b = jnp.asarray(bias, jnp.float32).reshape(1)        # 1-D SMEM scalar
    # X streams in its native dtype (bf16 stays bf16); upcast happens in-kernel.

    k = _fold_factor(B, F)
    rows, width = B // k, k * F
    xf = x.reshape(rows, width)                          # metadata-only reshape

    x_isz = x.dtype.itemsize
    x_row_bytes = _round_up(width, 128) * x_isz          # lane-padded VMEM row of X
    out_row_bytes = 128 * 4                              # (TR, k) out row pads to 128 lanes
    vmem_cap = _vmem_capacity_bytes()
    tr = _choose_row_tile(rows, x_row_bytes, out_row_bytes, vmem_cap)
    grid = (pl.cdiv(rows, tr),)

    # Raise the scoped-VMEM limit when the double-buffered pipeline needs it
    # (scoped defaults: 16 MiB v5e / 32 MiB v6e,v7x; physical: 128/128/64 MiB).
    needed = 2 * tr * (x_row_bytes + out_row_bytes) + (1 << 20)
    vmem_limit = min(int(vmem_cap * 0.9), max(32 << 20, (needed * 5) // 4))

    kernel = functools.partial(_linear_kernel, num_feature=F, fold=k)

    # TODO(synk): for very wide F (a single TR=8 row tile blows the VMEM budget),
    # add a trailing "arbitrary" F-reduction grid axis with a (TR, k) f32 VMEM
    # accumulator and pl.when init/finalize.
    # TODO(synk): if a v7x profile shows exposed DMA at step boundaries, deepen the
    # X pipeline with pipeline_mode=pl.Buffered(3) (and re-check the VMEM budget).
    out = pl.pallas_call(
        kernel,
        out_shape=jax.ShapeDtypeStruct((rows, k), jnp.float32),
        grid=grid,
        in_specs=[
            pl.BlockSpec((tr, width), lambda i: (i, 0)),          # X: batch-tiled stream
            pl.BlockSpec((1, F), lambda i: (0, 0)),               # W: resident
            pl.BlockSpec(memory_space=pltpu.MemorySpace.SMEM),    # bias scalar
        ],
        out_specs=pl.BlockSpec((tr, k), lambda i: (i, 0)),
        compiler_params=pltpu.CompilerParams(
            dimension_semantics=("parallel",),                    # megacore split (v7x)
            vmem_limit_bytes=vmem_limit),
        cost_estimate=pl.CostEstimate(
            flops=2 * B * F,
            transcendentals=0,
            bytes_accessed=B * F * x_isz + B * 4 + F * 4 + 4),
    )(xf, w, b)

    return out.reshape(B, 1)   # metadata-only: flat order of (rows, k) == batch order


if __name__ == "__main__":
    B, F = 64, 32  # small demo shapes: batch=64, num_feature=32

    key = jax.random.PRNGKey(0)
    kx, kw, kb = jax.random.split(key, 3)

    x = jax.random.normal(kx, (B, F), dtype=jnp.float32)
    # Param init mimicking nn.Linear default: U(-1/sqrt(F), 1/sqrt(F))
    bound = 1.0 / (F ** 0.5)
    weight = jax.random.uniform(kw, (1, F), minval=-bound, maxval=bound,
                                dtype=jnp.float32)
    bias = jax.random.uniform(kb, (1,), minval=-bound, maxval=bound,
                              dtype=jnp.float32)

    # Exact-f32 elementwise reference (no MXU precision ambiguity).
    def reference(xv):
        return jnp.sum(xv * weight, axis=-1, keepdims=True) + bias

    # Folded path (B % (128 // F) == 0), grid of 2 tiles.
    out = linear_regression(x, weight, bias)
    jax.block_until_ready(out)
    assert out.shape == (B, 1)
    assert jnp.allclose(out, reference(x), atol=1e-5, rtol=1e-5)

    # Non-folded path with a partial last tile (B=10 is not a multiple of 4).
    x2 = jax.random.normal(kb, (10, F), dtype=jnp.float32)
    out2 = linear_regression(x2, weight, bias)
    jax.block_until_ready(out2)
    assert out2.shape == (10, 1)
    assert jnp.allclose(out2, reference(x2), atol=1e-5, rtol=1e-5)

    print("KERNEL_OK")
</pallas_src>

<mosaic_0001>
module attributes {stable_mosaic.version = 11 : i64} {
  func.func @_linear_kernel(%arg0: i32, %arg1: memref<8x128xf32, #tpu.memory_space<vmem>>, %arg2: memref<1x32xf32, #tpu.memory_space<vmem>>, %arg3: memref<1xf32, #tpu.memory_space<smem>>, %arg4: memref<8x4xf32, #tpu.memory_space<vmem>>) attributes {dimension_semantics = [#tpu.dimension_semantics<parallel>], iteration_bounds = array<i64: 2>, scalar_prefetch = 0 : i64, scratch_operands = 0 : i64, tpu.core_type = #tpu.core_type<tc>, window_params = [{transform_indices = @transform_0, window_bounds = array<i64: 8, 128>}, {pipeline_mode = #tpu.pipeline_mode<synchronous>, transform_indices = @transform_1, window_bounds = array<i64: 1, 32>}, {transform_indices = @transform_2, window_bounds = array<i64: 1>}, {transform_indices = @transform_3, window_bounds = array<i64: 8, 4>}]} {
    %c0 = arith.constant 0 : index
    %c0_0 = arith.constant 0 : index
    %0 = vector.load %arg1[%c0, %c0_0] : memref<8x128xf32, #tpu.memory_space<vmem>>, vector<8x128xf32>
    %c0_1 = arith.constant 0 : index
    %c0_2 = arith.constant 0 : index
    %1 = vector.load %arg2[%c0_1, %c0_2] : memref<1x32xf32, #tpu.memory_space<vmem>>, vector<1x32xf32>
    %2 = tpu.iota {dimensions = array<i32: 1>} : vector<1x4xi32>
    %cst = arith.constant 0.000000e+00 : f32
    %3 = vector.broadcast %cst : f32 to vector<8x4xf32>
    %4 = vector.extract_strided_slice %0 {offsets = [0, 0], sizes = [8, 32], strides = [1, 1]} : vector<8x128xf32> to vector<8x32xf32>
    %5 = vector.broadcast %1 : vector<1x32xf32> to vector<8x32xf32>
    %6 = arith.mulf %4, %5 : vector<8x32xf32>
    %cst_3 = arith.constant dense<0.000000e+00> : vector<8xf32>
    %7 = vector.multi_reduction <add>, %6, %cst_3 [1] : vector<8x32xf32> to vector<8xf32>
    %8 = vector.shape_cast %7 : vector<8xf32> to vector<8x1xf32>
    %c0_i32 = arith.constant 0 : i32
    %9 = vector.broadcast %c0_i32 : i32 to vector<1x4xi32>
    %10 = arith.cmpi eq, %2, %9 : vector<1x4xi32>
    %11 = vector.shape_cast %10 : vector<1x4xi1> to vector<1x4xi1>
    %12 = vector.broadcast %11 : vector<1x4xi1> to vector<8x4xi1>
    %13 = vector.shape_cast %8 : vector<8x1xf32> to vector<8x1xf32>
    %14 = vector.broadcast %13 : vector<8x1xf32> to vector<8x4xf32>
    %15 = arith.select %12, %14, %3 : vector<8x4xi1>, vector<8x4xf32>
    %16 = vector.extract_strided_slice %0 {offsets = [0, 32], sizes = [8, 32], strides = [1, 1]} : vector<8x128xf32> to vector<8x32xf32>
    %17 = vector.broadcast %1 : vector<1x32xf32> to vector<8x32xf32>
    %18 = arith.mulf %16, %17 : vector<8x32xf32>
    %cst_4 = arith.constant dense<0.000000e+00> : vector<8xf32>
    %19 = vector.multi_reduction <add>, %18, %cst_4 [1] : vector<8x32xf32> to vector<8xf32>
    %20 = vector.shape_cast %19 : vector<8xf32> to vector<8x1xf32>
    %c1_i32 = arith.constant 1 : i32
    %21 = vector.broadcast %c1_i32 : i32 to vector<1x4xi32>
    %22 = arith.cmpi eq, %2, %21 : vector<1x4xi32>
    %23 = vector.shape_cast %22 : vector<1x4xi1> to vector<1x4xi1>
    %24 = vector.broadcast %23 : vector<1x4xi1> to vector<8x4xi1>
    %25 = vector.shape_cast %20 : vector<8x1xf32> to vector<8x1xf32>
    %26 = vector.broadcast %25 : vector<8x1xf32> to vector<8x4xf32>
    %27 = arith.select %24, %26, %15 : vector<8x4xi1>, vector<8x4xf32>
    %28 = vector.extract_strided_slice %0 {offsets = [0, 64], sizes = [8, 32], strides = [1, 1]} : vector<8x128xf32> to vector<8x32xf32>
    %29 = vector.broadcast %1 : vector<1x32xf32> to vector<8x32xf32>
    %30 = arith.mulf %28, %29 : vector<8x32xf32>
    %cst_5 = arith.constant dense<0.000000e+00> : vector<8xf32>
    %31 = vector.multi_reduction <add>, %30, %cst_5 [1] : vector<8x32xf32> to vector<8xf32>
    %32 = vector.shape_cast %31 : vector<8xf32> to vector<8x1xf32>
    %c2_i32 = arith.constant 2 : i32
    %33 = vector.broadcast %c2_i32 : i32 to vector<1x4xi32>
    %34 = arith.cmpi eq, %2, %33 : vector<1x4xi32>
    %35 = vector.shape_cast %34 : vector<1x4xi1> to vector<1x4xi1>
    %36 = vector.broadcast %35 : vector<1x4xi1> to vector<8x4xi1>
    %37 = vector.shape_cast %32 : vector<8x1xf32> to vector<8x1xf32>
    %38 = vector.broadcast %37 : vector<8x1xf32> to vector<8x4xf32>
    %39 = arith.select %36, %38, %27 : vector<8x4xi1>, vector<8x4xf32>
    %40 = vector.extract_strided_slice %0 {offsets = [0, 96], sizes = [8, 32], strides = [1, 1]} : vector<8x128xf32> to vector<8x32xf32>
    %41 = vector.broadcast %1 : vector<1x32xf32> to vector<8x32xf32>
    %42 = arith.mulf %40, %41 : vector<8x32xf32>
    %cst_6 = arith.constant dense<0.000000e+00> : vector<8xf32>
    %43 = vector.multi_reduction <add>, %42, %cst_6 [1] : vector<8x32xf32> to vector<8xf32>
    %44 = vector.shape_cast %43 : vector<8xf32> to vector<8x1xf32>
    %c3_i32 = arith.constant 3 : i32
    %45 = vector.broadcast %c3_i32 : i32 to vector<1x4xi32>
    %46 = arith.cmpi eq, %2, %45 : vector<1x4xi32>
    %47 = vector.shape_cast %46 : vector<1x4xi1> to vector<1x4xi1>
    %48 = vector.broadcast %47 : vector<1x4xi1> to vector<8x4xi1>
    %49 = vector.shape_cast %44 : vector<8x1xf32> to vector<8x1xf32>
    %50 = vector.broadcast %49 : vector<8x1xf32> to vector<8x4xf32>
    %51 = arith.select %48, %50, %39 : vector<8x4xi1>, vector<8x4xf32>
    %c0_7 = arith.constant 0 : index
    %52 = memref.load %arg3[%c0_7] : memref<1xf32, #tpu.memory_space<smem>>
    %53 = vector.broadcast %52 : f32 to vector<8x4xf32>
    %54 = arith.addf %51, %53 : vector<8x4xf32>
    %c0_8 = arith.constant 0 : index
    %c0_9 = arith.constant 0 : index
    %55 = vector.load %arg4[%c0_8, %c0_9] : memref<8x4xf32, #tpu.memory_space<vmem>>, vector<8x4xf32>
    tpu.vector_store %arg4[%c0_8, %c0_9], %54 {strides = array<i32>} : memref<8x4xf32, #tpu.memory_space<vmem>>, vector<8x4xf32>,
    return
  }
  func.func @transform_0(%arg0: i32) -> (i32, i32) {
    %c0_i32 = arith.constant 0 : i32
    %c0_i32_0 = arith.constant 0 : i32
    return %arg0, %c0_i32 : i32, i32
  }
  func.func @transform_1(%arg0: i32) -> (i32, i32) {
    %c0_i32 = arith.constant 0 : i32
    %c0_i32_0 = arith.constant 0 : i32
    %c0_i32_1 = arith.constant 0 : i32
    return %c0_i32, %c0_i32_0 : i32, i32
  }
  func.func @transform_2(%arg0: i32) -> i32 {
    %c0_i32 = arith.constant 0 : i32
    %c0_i32_0 = arith.constant 0 : i32
    return %c0_i32 : i32
  }
  func.func @transform_3(%arg0: i32) -> (i32, i32) {
    %c0_i32 = arith.constant 0 : i32
    %c0_i32_0 = arith.constant 0 : i32
    return %arg0, %c0_i32 : i32, i32
  }
}

</mosaic_0001>

<llo_original>
// kernel: tpu_custom_call.1
$region0: #{tpu_custom_call.1}
  #allocation0 [shape = 'u32[]', space=smem, size = 0x4, offset = 0x4, fixed_abs, tag = 'smem constant byte address 0x4 - core index']
  #allocation1 [shape = 'u32[144,128]{1,0:T(1,128)}', space=vmem, size = 0x12000, scoped, tag = 'internal scratch']
  #allocation2 [shape = 'f32[1]{0:T(128)S(6)}', space=smem, size = 0x200, scoped, tag = 'scoped memory for tpu_custom_call.1']
  %s0 = inlined_call_operand.hbm [shape: f32[16,128], index: 0, kind: input, shape index: {}]
  %s1 = inlined_call_operand.vmem [shape: f32[1,32], index: 1, kind: input, shape index: {}]
  %s2 = inlined_call_operand.<no memory space> [shape: f32[1], index: 2, kind: input, shape index: {}]
  %s3 = inlined_call_operand.vmem [shape: f32[16,4], index: 3, kind: output, shape index: {}]
  %s4 = sld [smem:[#allocation0]]
  $region49: #{tpu_custom_call.1} parent=0
    _
  %s6 = ssub.s32 1, %s4
  %s7 = scalar_select 0, %s6, %s4
  %8 = sst [smem:[#allocation2]] %s2
  $region1: #{tpu_custom_call.1} parent=0
    #allocation3 [shape = 'u8[8192]{0}', space=vmem, size = 0x2000, scoped, tag = 'input window, operand 0']
    #allocation4 [shape = 's32[2]{0}', space=sflag, size = 0x8, scoped, tag = 'scoped memory for tpu_custom_call.1']
    %9 = vsyncpa [#allocation4], 0
    %s10 = scalar_lea.sflag [#allocation4], 1
    %11 = vsyncpa %s10, 0
    loop: start=0, step=1, limit=4
    $region2: #{tpu_custom_call.1} parent=1 // loop_pre_header
      _
    $region3: #{tpu_custom_call.1} parent=1 // loop_header
      %s13 = sphi 0, %s17
      %p14 = scmp.ge.s32.totalorder %s13, 4
      %s23 = sphi 0, %s25
      %s26 = sphi 0, %s23
      %s27 = sphi 0, %s26
      %s43 = sphi 0, %s27
      %s47 = sphi 0, %s47
      %s49 = sphi 0, %s47
      %s50 = sphi 0, %s49
      %s64 = sphi 0, %s50
      %s68 = sphi 0, %s68
      %s70 = sphi 0, %s68
      %s71 = sphi 0, %s70
      %s85 = sphi 0, %s71
      %s91 = sphi 0, %s93
      %s94 = sphi 0, %s91
      %s95 = sphi 0, %s94
      %s111 = sphi 0, %s95
    $region4: #{tpu_custom_call.1} parent=1 // loop_header_branch
      %16 = sbr.rel (%p14) target = $region8
    $region5: #{tpu_custom_call.1} parent=1 // loop_body
      %s18 = ssub.s32 %s13, 1
      %s19 = ssub.s32 %s13, 2
      %s20 = sadd.s32 %s13, 1
      %s21 = ssub.s32 %s13, %s20
      %p22 = scmp.eq.s32.totalorder %s21, 0
      %s24 = sadd.s32 %s23, 1
      %s25 = scalar_select %p22, %s23, %s24
      %p28 = pneg %p22
      %p29 = scmp.eq.s32.totalorder %s13, 1
      %p30 = por %p28, %p29
      %p31 = scmp.ne.s32.totalorder %s23, %s26
      %p32 = scmp.eq.s32.totalorder %s13, 0
      %p33 = por %p31, %p32
      %p34 = scmp.ne.s32.totalorder %s23, %s26
      %p35 = scmp.eq.s32.totalorder %s18, 1
      %p36 = por %p34, %p35
      %p37 = scmp.ne.s32.totalorder %s26, %s27
      %p38 = scmp.eq.s32.totalorder %s18, 0
      %p39 = por %p37, %p38
      %p40 = scmp.ne.s32.totalorder %s26, %s27
      %p41 = scmp.eq.s32.totalorder %s19, 1
      %p42 = por %p40, %p41
      %p44 = scmp.ne.s32.totalorder %s27, %s43
      %p45 = scmp.eq.s32.totalorder %s19, 0
      %p46 = por %p44, %p45
      %s48 = sadd.s32 %s47, 1
      %p51 = scmp.eq.s32.totalorder %s13, 1
      %p52 = scmp.ne.s32.totalorder %s47, %s49
      %p53 = scmp.eq.s32.totalorder %s13, 0
      %p54 = por %p52, %p53
      %p55 = scmp.ne.s32.totalorder %s47, %s49
      %p56 = scmp.eq.s32.totalorder %s18, 1
      %p57 = por %p55, %p56
      %p58 = scmp.ne.s32.totalorder %s49, %s50
      %p59 = scmp.eq.s32.totalorder %s18, 0
      %p60 = por %p58, %p59
      %p61 = scmp.ne.s32.totalorder %s49, %s50
      %p62 = scmp.eq.s32.totalorder %s19, 1
      %p63 = por %p61, %p62
      %p65 = scmp.ne.s32.totalorder %s50, %s64
      %p66 = scmp.eq.s32.totalorder %s19, 0
      %p67 = por %p65, %p66
      %s69 = sadd.s32 %s68, 1
      %p72 = scmp.eq.s32.totalorder %s13, 1
      %p73 = scmp.ne.s32.totalorder %s68, %s70
      %p74 = scmp.eq.s32.totalorder %s13, 0
      %p75 = por %p73, %p74
      %p76 = scmp.ne.s32.totalorder %s68, %s70
      %p77 = scmp.eq.s32.totalorder %s18, 1
      %p78 = por %p76, %p77
      %p79 = scmp.ne.s32.totalorder %s70, %s71
      %p80 = scmp.eq.s32.totalorder %s18, 0
      %p81 = por %p79, %p80
      %p82 = scmp.ne.s32.totalorder %s70, %s71
      %p83 = scmp.eq.s32.totalorder %s19, 1
      %p84 = por %p82, %p83
      %p86 = scmp.ne.s32.totalorder %s71, %s85
      %p87 = scmp.eq.s32.totalorder %s19, 0
      %p88 = por %p86, %p87
      %s89 = ssub.s32 %s13, %s20
      %p90 = scmp.eq.s32.totalorder %s89, 0
      %s92 = sadd.s32 %s91, 1
      %s93 = scalar_select %p90, %s91, %s92
      %p96 = pneg %p90
      %p97 = scmp.eq.s32.totalorder %s13, 1
      %p98 = por %p96, %p97
      %p99 = scmp.ne.s32.totalorder %s91, %s94
      %p100 = scmp.eq.s32.totalorder %s13, 0
      %p101 = por %p99, %p100
      %p102 = scmp.ne.s32.totalorder %s91, %s94
      %p103 = scmp.eq.s32.totalorder %s18, 1
      %p104 = por %p102, %p103
      %p105 = scmp.ne.s32.totalorder %s94, %s95
      %p106 = scmp.eq.s32.totalorder %s18, 0
      %p107 = por %p105, %p106
      %p108 = scmp.ne.s32.totalorder %s94, %s95
      %p109 = scmp.eq.s32.totalorder %s19, 1
      %p110 = por %p108, %p109
      %p112 = scmp.ne.s32.totalorder %s95, %s111
      %p113 = scmp.eq.s32.totalorder %s19, 0
      %p114 = por %p112, %p113
      %p115 = scmp.le.s32.totalorder 1, %s13
      %p116 = scmp.lt.s32.totalorder %s13, 3
      %p117 = pnand %p115, %p116
      %p118 = pneg %p117
      // Predicated region
      $region9: #{tpu_custom_call.1} parent=5 // pred_check
        _
      $region10: #{tpu_custom_call.1} parent=5 // pred_check_branch
        %120 = sbr.rel (%p117) target = $region12
      $region11: #{tpu_custom_call.1} parent=5 // pred_region
        %s121 = ssub.s32 %s13, 1
        // Predicated region
        $region13: #{tpu_custom_call.1} parent=11 // pred_check
          %p122 = pneg %p60
        $region14: #{tpu_custom_call.1} parent=11 // pred_check_branch
          %124 = sbr.rel (%p122) target = $region16
        $region15: #{tpu_custom_call.1} parent=11 // pred_region
          _
        $region16: #{tpu_custom_call.1} parent=11 // pred_fallthru
          _
        // Predicated region
        $region17: #{tpu_custom_call.1} parent=11 // pred_check
          %p125 = pneg %p81
        $region18: #{tpu_custom_call.1} parent=11 // pred_check_branch
          %127 = sbr.rel (%p125) target = $region20
        $region19: #{tpu_custom_call.1} parent=11 // pred_region
          _
        $region20: #{tpu_custom_call.1} parent=11 // pred_fallthru
          _
      $region12: #{tpu_custom_call.1} parent=5 // pred_fallthru
        _
      %p128 = scmp.lt.s32.totalorder %s13, 2
      // Predicated region
      $region21: #{tpu_custom_call.1} parent=5 // pred_check
        %p129 = pneg %p128
      $region22: #{tpu_custom_call.1} parent=5 // pred_check_branch
        %131 = sbr.rel (%p129) target = $region24
      $region23: #{tpu_custom_call.1} parent=5 // pred_region
        // Predicated region
        $region25: #{tpu_custom_call.1} parent=23 // pred_check
          %p132 = pneg %p33
        $region26: #{tpu_custom_call.1} parent=23 // pred_check_branch
          %134 = sbr.rel (%p132) target = $region28
        $region27: #{tpu_custom_call.1} parent=23 // pred_region
          %s135 = sand.u32 %s23, 1
          %s136 = scalar_lea.sflag [#allocation4], %s135
          %s137 = sand.u32 %s23, 1
          %s138 = smul.addr %s137, 8
          %s139 = scalar_lea.vmem [#allocation3], %s138
          %s141 = ssub.s32 128, 128
          %142 = vsyncadd %s136, %s141
          %s143 = smul.addr %s13, 128
          %s144 = scalar_lea.hbm %s0, %s143
          %s146 = sshll.u32 %s139, 4
          %s147 = int_to_ptr.vmem [resolvable:$true] %s146
          %149 = dma.hbm_to_vmem [thread:$0]  %s144, 128, %s147, %s136
        $region28: #{tpu_custom_call.1} parent=23 // pred_fallthru
          _
      $region24: #{tpu_custom_call.1} parent=5 // pred_fallthru
        _
      %p150 = scmp.le.s32.totalorder 1, %s13
      %p151 = scmp.lt.s32.totalorder %s13, 3
      %p152 = pnand %p150, %p151
      %p153 = pneg %p152
      // Predicated region
      $region29: #{tpu_custom_call.1} parent=5 // pred_check
        _
      $region30: #{tpu_custom_call.1} parent=5 // pred_check_branch
        %155 = sbr.rel (%p152) target = $region32
      $region31: #{tpu_custom_call.1} parent=5 // pred_region
        %s156 = ssub.s32 %s13, 1
        %s157 = sand.u32 %s26, 1
        %s158 = scalar_lea.sflag [#allocation4], %s157
        %s159 = sand.u32 %s26, 1
        %s160 = smul.addr %s159, 8
        %s161 = scalar_lea.vmem [#allocation3], %s160
        // Predicated region
        $region33: #{tpu_custom_call.1} parent=31 // pred_check
          %p162 = pneg %p39
        $region34: #{tpu_custom_call.1} parent=31 // pred_check_branch
          %164 = sbr.rel (%p162) target = $region36
        $region35: #{tpu_custom_call.1} parent=31 // pred_region
          %165 = dma.done %s158, 128
        $region36: #{tpu_custom_call.1} parent=31 // pred_fallthru
          _
        %s166 = sand.u32 %s26, 1
        %s167 = scalar_lea.sflag [#allocation4], %s166
        %s168 = sand.u32 %s26, 1
        %s169 = smul.addr %s168, 8
        %s170 = scalar_lea.vmem [#allocation3], %s169
        %p171 = pneg %p39
        %p172 = pneg %p36
        %p173 = pneg %p60
        %p174 = pneg %p57
        %p175 = pneg %p81
        %p176 = pneg %p78
        %p177 = pneg %p107
        %p178 = pneg %p104
        %p179 = scmp.lt.s32.totalorder %s18, 1
        %s180 = scalar_select %p179, %s18, 1
        %s181 = smul.addr %s180, 8
        %s182 = scalar_lea.vmem %s3, %s181
        %p183 = scmp.lt.s32.totalorder %s18, 1
        %s184 = scalar_select %p183, %s18, 1
        %s185 = smul.addr %s184, 8
        %s186 = scalar_lea.vmem %s3, %s185
        %v187 = vld [vmem:[%s161] sm:$0xff]
        %v188 = vld [vmem:[%s1] sm:$0x1]
        %v189 = vlaneseq
        %v190 = vand.u32 %v189, 127
        %v192 = vlaneseq
        %v193 = vshrl.u32 %v192, 7
        %v194 = vsub.s32 0, %v193
        %v195 = vrot.slane %v188, %v194
        %v197 = vmul.f32 %v187, %v195
        %vm198 = vcmask 261120
        %v199 = vsel %vm198, %v197, 0.0
        %200 = vadd.xlane.f32.xlu0 %v199
        %v201 = vpop.xlane.xlu0 %200
        %vm202 = vcmp.eq.s32.totalorder %v190, 0
        %v203 = vsel %vm202, 1, 0
        %vm204 = vcmp.eq.s32.totalorder %v203, 1
        %v205 = vsel %vm204, %v201, 0.0
        %206 = vrot.lane.b32.xlu0 %v195, 32
        %v207 = vpop.permute.xlu0 %206
        %v209 = vmul.f32 %v187, %v207
        %211 = vrot.lane.b32.xlu0 %v209, 96
        %v212 = vpop.permute.xlu0 %211
        %v214 = vsel %vm198, %v212, 0.0
        %215 = vadd.xlane.f32.xlu0 %v214
        %v216 = vpop.xlane.xlu0 %215
        %vm217 = vcmp.eq.s32.totalorder %v190, 1
        %v218 = vsel %vm217, 1, 0
        %vm219 = vcmp.eq.s32.totalorder %v218, 1
        %v220 = vsel %vm219, %v216, %v205
        %221 = vrot.lane.b32.xlu0 %v195, 64
        %v222 = vpop.permute.xlu0 %221
        %v224 = vmul.f32 %v187, %v222
        %226 = vrot.lane.b32.xlu0 %v224, 64
        %v227 = vpop.permute.xlu0 %226
        %v229 = vsel %vm198, %v227, 0.0
        %230 = vadd.xlane.f32.xlu0 %v229
        %v231 = vpop.xlane.xlu0 %230
        %vm232 = vcmp.eq.s32.totalorder %v190, 2
        %v233 = vsel %vm232, 1, 0
        %vm234 = vcmp.eq.s32.totalorder %v233, 1
        %v235 = vsel %vm234, %v231, %v220
        %236 = vrot.lane.b32.xlu0 %v195, 96
        %v237 = vpop.permute.xlu0 %236
        %v239 = vmul.f32 %v187, %v237
        %241 = vrot.lane.b32.xlu0 %v239, 32
        %v242 = vpop.permute.xlu0 %241
        %v244 = vsel %vm198, %v242, 0.0
        %245 = vadd.xlane.f32.xlu0 %v244
        %v246 = vpop.xlane.xlu0 %245
        %vm247 = vcmp.eq.s32.totalorder %v190, 3
        %v248 = vsel %vm247, 1, 0
        %vm249 = vcmp.eq.s32.totalorder %v248, 1
        %v250 = vsel %vm249, %v246, %v235
        %s251 = sld [smem:[#allocation2]]
        %v252 = vstv %s251
        %v253 = vadd.f32 %v250, %v252
        %vm254 = vcmask 31744
        %255 = vst.msk [vmem:[%s186] sm:$0xff] %vm254, %v253
        %p256 = scmp.lt.s32.totalorder %s18, 1
        %s257 = scalar_select %p256, %s18, 1
        %s258 = smul.addr %s257, 8
        %s259 = scalar_lea.vmem %s3, %s258
        // Predicated region
        $region37: #{tpu_custom_call.1} parent=31 // pred_check
          %p260 = pneg %p104
        $region38: #{tpu_custom_call.1} parent=31 // pred_check_branch
          %262 = sbr.rel (%p260) target = $region40
        $region39: #{tpu_custom_call.1} parent=31 // pred_region
          _
        $region40: #{tpu_custom_call.1} parent=31 // pred_fallthru
          _
      $region32: #{tpu_custom_call.1} parent=5 // pred_fallthru
        _
      %p263 = scmp.le.s32.totalorder 2, %s13
      // Predicated region
      $region41: #{tpu_custom_call.1} parent=5 // pred_check
        %p264 = pneg %p263
      $region42: #{tpu_custom_call.1} parent=5 // pred_check_branch
        %266 = sbr.rel (%p264) target = $region44
      $region43: #{tpu_custom_call.1} parent=5 // pred_region
        %s267 = ssub.s32 %s13, 2
        // Predicated region
        $region45: #{tpu_custom_call.1} parent=43 // pred_check
          %p268 = pneg %p110
        $region46: #{tpu_custom_call.1} parent=43 // pred_check_branch
          %270 = sbr.rel (%p268) target = $region48
        $region47: #{tpu_custom_call.1} parent=43 // pred_region
          %p271 = scmp.lt.s32.totalorder %s19, 1
          %s272 = scalar_select %p271, %s19, 1
          %s273 = smul.addr %s272, 8
          %s274 = scalar_lea.vmem %s3, %s273
        $region48: #{tpu_custom_call.1} parent=43 // pred_fallthru
          _
      $region44: #{tpu_custom_call.1} parent=5 // pred_fallthru
        _
    $region6: #{tpu_custom_call.1} parent=1 // loop_footer
      %s17 = sadd.s32 1, %s13
    $region7: #{tpu_custom_call.1} parent=1 // loop_footer_branch
      %12 = sbr.rel target = $region3
    $region8: #{tpu_custom_call.1} parent=1 // loop_exit
      _
    %275 = vsyncpa [#allocation4], 1
    %s276 = scalar_lea.sflag [#allocation4], 1
    %277 = vsyncpa %s276, 1

</llo_original>
